<compile_context>
chip_gen: v7x
topology: tpu7x:2x2x1
jax: 0.10.0
libtpu: 0.0.40
codegen_flags: <defaults>
</compile_context>

<pallas_src>
import functools

import jax
import jax.numpy as jnp
from jax.experimental import pallas as pl
from jax.experimental.pallas import tpu as pltpu

NH1 = 128
NH2 = 128
EPS = 1e-5
LANE = 128
SUBLANE = 8
MAX_TB = 512  # batch-tile rows per grid step (multiple of 8)


def cllnet_kernel(x_ref, w1_ref, b1_ref, w2_ref, b2_ref, wf_ref, bf_ref, out_ref):
    """One batch tile of the whole forward (all matmul operands are bf16).

    x   : [TB, F]        bf16
    w1  : [F, NH1]       bf16 (BN1 folded)       b1 : [1, NH1]     f32
    w2  : [NH1, O*NH2]   bf16 (BN2 folded)       b2 : [1, O*NH2]   f32
    wf  : [O*NH2, Cpad]  bf16 (block-diagonal)   bf : [1, Cpad]    f32
    out : [TB, Cpad]     f32
    """
    h = jnp.maximum(
        jnp.dot(x_ref[...], w1_ref[...], preferred_element_type=jnp.float32)
        + b1_ref[...], 0.0)
    z = jnp.maximum(
        jnp.dot(h.astype(jnp.bfloat16), w2_ref[...],
                preferred_element_type=jnp.float32) + b2_ref[...], 0.0)
    out_ref[...] = (
        jnp.dot(z.astype(jnp.bfloat16), wf_ref[...],
                preferred_element_type=jnp.float32) + bf_ref[...])


def prepare_params(p):
    """One-time packing (run ONCE, outside the jitted forward).

    Folds BatchNorm (running stats + affine, eps=1e-5) into the linear layers,
    fuses the O per-outcome fc2 heads into one [NH1, O*NH2] matrix, packs the O
    fc_final heads into a block-diagonal [O*NH2, Cpad] matrix (Cpad = 128-padded
    O*C), and casts the matmul weights to bf16 (biases stay f32).
    """
    O, _, C = p["wf"].shape

    scale1 = p["g1"] * jax.lax.rsqrt(p["rv1"] + EPS)                  # [1, NH1]
    w1f = (p["w1"] * scale1).astype(jnp.bfloat16)                     # [F, NH1]
    b1f = ((p["b1"] - p["rm1"]) * scale1 + p["be1"]).astype(jnp.float32)

    scale2 = p["g2"] * jax.lax.rsqrt(p["rv2"] + EPS)                  # [1, NH2]
    w2s = p["w2"] * scale2[None]                                      # [O, NH1, NH2]
    w2f = jnp.transpose(w2s, (1, 0, 2)).reshape(NH1, O * NH2).astype(jnp.bfloat16)
    b2f = ((p["b2"] - p["rm2"]) * scale2 + p["be2"]).reshape(1, O * NH2)
    b2f = b2f.astype(jnp.float32)

    OC = O * C
    OC_pad = max(LANE, ((OC + LANE - 1) // LANE) * LANE)
    wf_bd = jnp.zeros((O * NH2, OC_pad), jnp.float32)
    bf_fl = jnp.zeros((1, OC_pad), jnp.float32)
    # TODO(synk): block-diagonal waste grows ~O**2; for large O switch to O
    #             per-outcome [NH2, Cpad] dots each writing a 128-lane slice.
    for o in range(O):                                                # O is static
        wf_bd = wf_bd.at[o * NH2:(o + 1) * NH2, o * C:(o + 1) * C].set(p["wf"][o])
        bf_fl = bf_fl.at[0, o * C:(o + 1) * C].set(p["bf"][o])

    packed = dict(w1=w1f, b1=b1f, w2=w2f, b2=b2f,
                  wf=wf_bd.astype(jnp.bfloat16), bf=bf_fl)
    meta = dict(O=O, C=C, OC_pad=OC_pad)
    return packed, meta


@functools.partial(jax.jit, static_argnames=("O", "C", "OC_pad"))
def cllnet_forward(x, w1, b1, w2, b2, wf, bf, *, O, C, OC_pad):
    B, F = x.shape

    # Batch tiling: TB multiple of 8, capped at MAX_TB; pad B up if needed.
    B_pad = max(SUBLANE, ((B + SUBLANE - 1) // SUBLANE) * SUBLANE)
    TB = B_pad if B_pad <= MAX_TB else MAX_TB
    B_pad = ((B_pad + TB - 1) // TB) * TB

    xb = x.astype(jnp.bfloat16)
    if B_pad != B:
        xb = jnp.pad(xb, ((0, B_pad - B), (0, 0)))

    # VMEM budget: resident weights + double-buffered x/out tiles (+ margin).
    w_bytes = (w1.size + w2.size + wf.size) * 2 + (b1.size + b2.size + bf.size) * 4
    tile_bytes = TB * F * 2 + TB * OC_pad * 4
    vmem_limit = int(min(100 * 1024 * 1024,
                         max(4 * 1024 * 1024, 2 * (w_bytes + 2 * tile_bytes))))

    out = pl.pallas_call(
        cllnet_kernel,
        out_shape=jax.ShapeDtypeStruct((B_pad, OC_pad), jnp.float32),
        grid=(B_pad // TB,),
        in_specs=[
            pl.BlockSpec((TB, F), lambda i: (i, 0)),            # x: streamed per tile
            pl.BlockSpec((F, NH1), lambda i: (0, 0)),           # weights: VMEM-resident
            pl.BlockSpec((1, NH1), lambda i: (0, 0)),           #   (constant block idx
            pl.BlockSpec((NH1, O * NH2), lambda i: (0, 0)),     #    => fetched once)
            pl.BlockSpec((1, O * NH2), lambda i: (0, 0)),
            pl.BlockSpec((O * NH2, OC_pad), lambda i: (0, 0)),
            pl.BlockSpec((1, OC_pad), lambda i: (0, 0)),
        ],
        out_specs=pl.BlockSpec((TB, OC_pad), lambda i: (i, 0)),
        compiler_params=pltpu.CompilerParams(
            dimension_semantics=("parallel",),   # v7x: shard batch tiles over 2 TCs
            vmem_limit_bytes=vmem_limit,
        ),
    )(xb, w1, b1, w2, b2, wf, bf)

    # [B, O*C] -> [O, B, C]  (matches torch.cat(dim=0) + reshape)
    return out[:B, :O * C].reshape(B, O, C).transpose(1, 0, 2)


def ref_forward(x, p):
    """Pure-JAX f32 reference mirroring the PyTorch module (eval mode)."""
    y = x @ p["w1"] + p["b1"][0]
    y = (y - p["rm1"][0]) / jnp.sqrt(p["rv1"][0] + EPS) * p["g1"][0] + p["be1"][0]
    h = jnp.maximum(y, 0.0)
    outs = []
    for i in range(p["w2"].shape[0]):
        z = h @ p["w2"][i] + p["b2"][i]
        z = (z - p["rm2"][0]) / jnp.sqrt(p["rv2"][0] + EPS) * p["g2"][0] + p["be2"][0]
        z = jnp.maximum(z, 0.0)
        outs.append(z @ p["wf"][i] + p["bf"][i])
    return jnp.stack(outs, axis=0)


def ref_forward_packed(x, packed, O, C):
    """Reference that applies the same bf16 quantization as the kernel."""
    B = x.shape[0]
    xb = x.astype(jnp.bfloat16)
    h = jnp.maximum(
        jnp.dot(xb, packed["w1"], preferred_element_type=jnp.float32)
        + packed["b1"], 0.0)
    z = jnp.maximum(
        jnp.dot(h.astype(jnp.bfloat16), packed["w2"],
                preferred_element_type=jnp.float32) + packed["b2"], 0.0)
    o = (jnp.dot(z.astype(jnp.bfloat16), packed["wf"],
                 preferred_element_type=jnp.float32) + packed["bf"])
    return o[:, :O * C].reshape(B, O, C).transpose(1, 0, 2)


def init_params(key, num_features, num_classes, num_outcomes):
    ks = jax.random.split(key, 12)
    p = {
        "w1": jax.random.normal(ks[0], (num_features, NH1), jnp.float32) * 0.1,
        "b1": jax.random.normal(ks[1], (1, NH1), jnp.float32) * 0.1,
        "g1": 1.0 + 0.1 * jax.random.normal(ks[2], (1, NH1), jnp.float32),
        "be1": 0.1 * jax.random.normal(ks[3], (1, NH1), jnp.float32),
        "rm1": 0.1 * jax.random.normal(ks[4], (1, NH1), jnp.float32),
        "rv1": 0.5 + jnp.abs(jax.random.normal(ks[5], (1, NH1), jnp.float32)),
        "w2": jax.random.normal(ks[6], (num_outcomes, NH1, NH2), jnp.float32) * 0.1,
        "b2": jax.random.normal(ks[7], (num_outcomes, NH2), jnp.float32) * 0.1,
        "g2": 1.0 + 0.1 * jax.random.normal(ks[8], (1, NH2), jnp.float32),
        "be2": 0.1 * jax.random.normal(ks[9], (1, NH2), jnp.float32),
        "rm2": 0.1 * jax.random.normal(ks[10], (1, NH2), jnp.float32),
        "rv2": 0.5 + jnp.abs(jax.random.normal(ks[11], (1, NH2), jnp.float32)),
    }
    kf = jax.random.split(jax.random.fold_in(key, 99), 2)
    p["wf"] = jax.random.normal(kf[0], (num_outcomes, NH2, num_classes), jnp.float32) * 0.1
    p["bf"] = jax.random.normal(kf[1], (num_outcomes, num_classes), jnp.float32) * 0.1
    return p


if __name__ == "__main__":
    batch = 8
    num_features = 32
    num_classes = 4
    num_outcomes = 3

    key = jax.random.PRNGKey(0)
    kx, kp = jax.random.split(key)
    x_cont = jax.random.normal(kx, (batch, num_features), jnp.float32)
    params = init_params(kp, num_features, num_classes, num_outcomes)

    # One-time parameter packing (outside the jitted forward / hot path).
    packed, meta = prepare_params(params)
    packed = jax.tree_util.tree_map(jax.block_until_ready, packed)

    out = cllnet_forward(x_cont, packed["w1"], packed["b1"], packed["w2"],
                         packed["b2"], packed["wf"], packed["bf"], **meta)
    out = jax.block_until_ready(out)

    assert out.shape == (num_outcomes, batch, num_classes), out.shape

    # Tight check against a reference using the same bf16 packing (kernel logic).
    ref_q = ref_forward_packed(x_cont, packed, meta["O"], meta["C"])
    assert jnp.allclose(out, ref_q, atol=2e-3, rtol=2e-3), \
        float(jnp.max(jnp.abs(out - ref_q)))

    # Loose check against the f32 PyTorch-mirroring reference (bf16 rounding).
    ref_f32 = ref_forward(x_cont, params)
    assert jnp.allclose(out, ref_f32, atol=1e-1, rtol=1e-1), \
        float(jnp.max(jnp.abs(out - ref_f32)))

    print("KERNEL_OK")
</pallas_src>

<mosaic_0001>
module attributes {stable_mosaic.version = 11 : i64} {
  func.func @cllnet_kernel(%arg0: i32, %arg1: memref<8x32xbf16, #tpu.memory_space<vmem>>, %arg2: memref<32x128xbf16, #tpu.memory_space<vmem>>, %arg3: memref<1x128xf32, #tpu.memory_space<vmem>>, %arg4: memref<128x384xbf16, #tpu.memory_space<vmem>>, %arg5: memref<1x384xf32, #tpu.memory_space<vmem>>, %arg6: memref<384x128xbf16, #tpu.memory_space<vmem>>, %arg7: memref<1x128xf32, #tpu.memory_space<vmem>>, %arg8: memref<8x128xf32, #tpu.memory_space<vmem>>) attributes {dimension_semantics = [#tpu.dimension_semantics<parallel>], iteration_bounds = array<i64: 1>, scalar_prefetch = 0 : i64, scratch_operands = 0 : i64, tpu.core_type = #tpu.core_type<tc>, window_params = [{transform_indices = @transform_0, window_bounds = array<i64: 8, 32>}, {pipeline_mode = #tpu.pipeline_mode<synchronous>, transform_indices = @transform_1, window_bounds = array<i64: 32, 128>}, {pipeline_mode = #tpu.pipeline_mode<synchronous>, transform_indices = @transform_2, window_bounds = array<i64: 1, 128>}, {pipeline_mode = #tpu.pipeline_mode<synchronous>, transform_indices = @transform_3, window_bounds = array<i64: 128, 384>}, {pipeline_mode = #tpu.pipeline_mode<synchronous>, transform_indices = @transform_4, window_bounds = array<i64: 1, 384>}, {pipeline_mode = #tpu.pipeline_mode<synchronous>, transform_indices = @transform_5, window_bounds = array<i64: 384, 128>}, {pipeline_mode = #tpu.pipeline_mode<synchronous>, transform_indices = @transform_6, window_bounds = array<i64: 1, 128>}, {transform_indices = @transform_7, window_bounds = array<i64: 8, 128>}]} {
    %c0 = arith.constant 0 : index
    %c0_0 = arith.constant 0 : index
    %0 = vector.load %arg1[%c0, %c0_0] : memref<8x32xbf16, #tpu.memory_space<vmem>>, vector<8x32xbf16>
    %c0_1 = arith.constant 0 : index
    %c0_2 = arith.constant 0 : index
    %1 = vector.load %arg2[%c0_1, %c0_2] : memref<32x128xbf16, #tpu.memory_space<vmem>>, vector<32x128xbf16>
    %cst = arith.constant dense<0.000000e+00> : vector<8x128xf32>
    %2 = tpu.matmul %0, %1, %cst {dimension_numbers = #tpu.dot_dimension_numbers<[1], [0], [0], [1], [0, 0, 1, 1], [], []>} : vector<8x32xbf16>, vector<32x128xbf16>, vector<8x128xf32> -> vector<8x128xf32>
    %c0_3 = arith.constant 0 : index
    %c0_4 = arith.constant 0 : index
    %3 = vector.load %arg3[%c0_3, %c0_4] : memref<1x128xf32, #tpu.memory_space<vmem>>, vector<1x128xf32>
    %4 = vector.broadcast %3 : vector<1x128xf32> to vector<8x128xf32>
    %5 = arith.addf %2, %4 : vector<8x128xf32>
    %cst_5 = arith.constant 0.000000e+00 : f32
    %6 = vector.broadcast %cst_5 : f32 to vector<8x128xf32>
    %7 = arith.maximumf %5, %6 : vector<8x128xf32>
    %8 = arith.truncf %7 : vector<8x128xf32> to vector<8x128xbf16>
    %c0_6 = arith.constant 0 : index
    %c0_7 = arith.constant 0 : index
    %9 = vector.load %arg4[%c0_6, %c0_7] : memref<128x384xbf16, #tpu.memory_space<vmem>>, vector<128x384xbf16>
    %cst_8 = arith.constant dense<0.000000e+00> : vector<8x384xf32>
    %10 = tpu.matmul %8, %9, %cst_8 {dimension_numbers = #tpu.dot_dimension_numbers<[1], [0], [0], [1], [0, 0, 1, 1], [], []>} : vector<8x128xbf16>, vector<128x384xbf16>, vector<8x384xf32> -> vector<8x384xf32>
    %c0_9 = arith.constant 0 : index
    %c0_10 = arith.constant 0 : index
    %11 = vector.load %arg5[%c0_9, %c0_10] : memref<1x384xf32, #tpu.memory_space<vmem>>, vector<1x384xf32>
    %12 = vector.broadcast %11 : vector<1x384xf32> to vector<8x384xf32>
    %13 = arith.addf %10, %12 : vector<8x384xf32>
    %cst_11 = arith.constant 0.000000e+00 : f32
    %14 = vector.broadcast %cst_11 : f32 to vector<8x384xf32>
    %15 = arith.maximumf %13, %14 : vector<8x384xf32>
    %16 = arith.truncf %15 : vector<8x384xf32> to vector<8x384xbf16>
    %c0_12 = arith.constant 0 : index
    %c0_13 = arith.constant 0 : index
    %17 = vector.load %arg6[%c0_12, %c0_13] : memref<384x128xbf16, #tpu.memory_space<vmem>>, vector<384x128xbf16>
    %cst_14 = arith.constant dense<0.000000e+00> : vector<8x128xf32>
    %18 = tpu.matmul %16, %17, %cst_14 {dimension_numbers = #tpu.dot_dimension_numbers<[1], [0], [0], [1], [0, 0, 1, 1], [], []>} : vector<8x384xbf16>, vector<384x128xbf16>, vector<8x128xf32> -> vector<8x128xf32>
    %c0_15 = arith.constant 0 : index
    %c0_16 = arith.constant 0 : index
    %19 = vector.load %arg7[%c0_15, %c0_16] : memref<1x128xf32, #tpu.memory_space<vmem>>, vector<1x128xf32>
    %20 = vector.broadcast %19 : vector<1x128xf32> to vector<8x128xf32>
    %21 = arith.addf %18, %20 : vector<8x128xf32>
    %c0_17 = arith.constant 0 : index
    %c0_18 = arith.constant 0 : index
    %22 = vector.load %arg8[%c0_17, %c0_18] : memref<8x128xf32, #tpu.memory_space<vmem>>, vector<8x128xf32>
    tpu.vector_store %arg8[%c0_17, %c0_18], %21 {strides = array<i32>} : memref<8x128xf32, #tpu.memory_space<vmem>>, vector<8x128xf32>,
    return
  }
  func.func @transform_0(%arg0: i32) -> (i32, i32) {
    %c0_i32 = arith.constant 0 : i32
    %c0_i32_0 = arith.constant 0 : i32
    return %arg0, %c0_i32 : i32, i32
  }
  func.func @transform_1(%arg0: i32) -> (i32, i32) {
    %c0_i32 = arith.constant 0 : i32
    %c0_i32_0 = arith.constant 0 : i32
    %c0_i32_1 = arith.constant 0 : i32
    return %c0_i32, %c0_i32_0 : i32, i32
  }
  func.func @transform_2(%arg0: i32) -> (i32, i32) {
    %c0_i32 = arith.constant 0 : i32
    %c0_i32_0 = arith.constant 0 : i32
    %c0_i32_1 = arith.constant 0 : i32
    return %c0_i32, %c0_i32_0 : i32, i32
  }
  func.func @transform_3(%arg0: i32) -> (i32, i32) {
    %c0_i32 = arith.constant 0 : i32
    %c0_i32_0 = arith.constant 0 : i32
    %c0_i32_1 = arith.constant 0 : i32
    return %c0_i32, %c0_i32_0 : i32, i32
  }
  func.func @transform_4(%arg0: i32) -> (i32, i32) {
    %c0_i32 = arith.constant 0 : i32
    %c0_i32_0 = arith.constant 0 : i32
    %c0_i32_1 = arith.constant 0 : i32
    return %c0_i32, %c0_i32_0 : i32, i32
  }
  func.func @transform_5(%arg0: i32) -> (i32, i32) {
    %c0_i32 = arith.constant 0 : i32
    %c0_i32_0 = arith.constant 0 : i32
    %c0_i32_1 = arith.constant 0 : i32
    return %c0_i32, %c0_i32_0 : i32, i32
  }
  func.func @transform_6(%arg0: i32) -> (i32, i32) {
    %c0_i32 = arith.constant 0 : i32
    %c0_i32_0 = arith.constant 0 : i32
    %c0_i32_1 = arith.constant 0 : i32
    return %c0_i32, %c0_i32_0 : i32, i32
  }
  func.func @transform_7(%arg0: i32) -> (i32, i32) {
    %c0_i32 = arith.constant 0 : i32
    %c0_i32_0 = arith.constant 0 : i32
    return %arg0, %c0_i32 : i32, i32
  }
}

</mosaic_0001>

<llo_original>
// kernel: cllnet_forward.1
$region0: #{cllnet_forward.1}
  #allocation0 [shape = 'u32[]', space=smem, size = 0x4, offset = 0x4, fixed_abs, tag = 'smem constant byte address 0x4 - core index']
  #allocation1 [shape = 'u32[144,128]{1,0:T(1,128)}', space=vmem, size = 0x12000, scoped, tag = 'internal scratch']
  %s0 = inlined_call_operand.vmem [shape: bf16[8,32], index: 0, kind: input, shape index: {}]
  %s1 = inlined_call_operand.hbm [shape: bf16[32,128], index: 1, kind: input, shape index: {}]
  %s2 = inlined_call_operand.vmem [shape: f32[1,128], index: 2, kind: input, shape index: {}]
  %s3 = inlined_call_operand.hbm [shape: bf16[128,384], index: 3, kind: input, shape index: {}]
  %s4 = inlined_call_operand.vmem [shape: f32[1,384], index: 4, kind: input, shape index: {}]
  %s5 = inlined_call_operand.hbm [shape: bf16[384,128], index: 5, kind: input, shape index: {}]
  %s6 = inlined_call_operand.vmem [shape: f32[1,128], index: 6, kind: input, shape index: {}]
  %s7 = inlined_call_operand.vmem [shape: f32[8,128], index: 7, kind: output, shape index: {}]
  %s8 = sld [smem:[#allocation0]]
  $region50: #{cllnet_forward.1} parent=0
    _
  %s10 = ssub.s32 1, %s8
  %s11 = scalar_select 0, %s10, %s8
  $region1: #{cllnet_forward.1} parent=0
    #allocation2 [shape = 'u8[8192]{0}', space=vmem, size = 0x2000, scoped, tag = 'input window, operand 1, single buffered']
    #allocation3 [shape = 's32[1]{0}', space=sflag, size = 0x4, scoped, tag = 'scoped memory for cllnet_forward.1']
    #allocation4 [shape = 'u8[98304]{0}', space=vmem, size = 0x18000, scoped, tag = 'input window, operand 3, single buffered']
    #allocation5 [shape = 's32[1]{0}', space=sflag, size = 0x4, scoped, tag = 'scoped memory for cllnet_forward.1']
    #allocation6 [shape = 'u8[98304]{0}', space=vmem, size = 0x18000, scoped, tag = 'input window, operand 5, single buffered']
    %12 = vsyncpa [#allocation3], 0
    %13 = vsyncpa [#allocation5], 0
    // Predicated region
    $region2: #{cllnet_forward.1} parent=1 // pred_check
      _
    $region3: #{cllnet_forward.1} parent=1 // pred_check_branch
      %15 = sbr.rel (0) target = $region5
    $region4: #{cllnet_forward.1} parent=1 // pred_region
      _
    $region5: #{cllnet_forward.1} parent=1 // pred_fallthru
      _
    // Predicated region
    $region6: #{cllnet_forward.1} parent=1 // pred_check
      _
    $region7: #{cllnet_forward.1} parent=1 // pred_check_branch
      %17 = sbr.rel (0) target = $region9
    $region8: #{cllnet_forward.1} parent=1 // pred_region
      %s19 = ssub.s32 256, 256
      %20 = vsyncadd [#allocation3], %s19
      %s21 = sshll.u32 [#allocation2], 4
      %s22 = int_to_ptr.vmem [resolvable:$true] %s21
      %27 = dma.hbm_to_vmem [thread:$0]  %s1, 256, %s22, [#allocation3], 64, 64, 4
    $region9: #{cllnet_forward.1} parent=1 // pred_fallthru
      _
    // Predicated region
    $region10: #{cllnet_forward.1} parent=1 // pred_check
      _
    $region11: #{cllnet_forward.1} parent=1 // pred_check_branch
      %29 = sbr.rel (0) target = $region13
    $region12: #{cllnet_forward.1} parent=1 // pred_region
      _
    $region13: #{cllnet_forward.1} parent=1 // pred_fallthru
      _
    // Predicated region
    $region14: #{cllnet_forward.1} parent=1 // pred_check
      _
    $region15: #{cllnet_forward.1} parent=1 // pred_check_branch
      %31 = sbr.rel (0) target = $region17
    $region16: #{cllnet_forward.1} parent=1 // pred_region
      %s33 = ssub.s32 3072, 3072
      %34 = vsyncadd [#allocation5], %s33
      %s35 = sshll.u32 [#allocation4], 4
      %s36 = int_to_ptr.vmem [resolvable:$true] %s35
      %41 = dma.hbm_to_vmem [thread:$0]  %s3, 3072, %s36, [#allocation5], 192, 192, 12
    $region17: #{cllnet_forward.1} parent=1 // pred_fallthru
      _
    // Predicated region
    $region18: #{cllnet_forward.1} parent=1 // pred_check
      _
    $region19: #{cllnet_forward.1} parent=1 // pred_check_branch
      %43 = sbr.rel (0) target = $region21
    $region20: #{cllnet_forward.1} parent=1 // pred_region
      _
    $region21: #{cllnet_forward.1} parent=1 // pred_fallthru
      _
    // Predicated region
    $region22: #{cllnet_forward.1} parent=1 // pred_check
      _
    $region23: #{cllnet_forward.1} parent=1 // pred_check_branch
      %45 = sbr.rel (0) target = $region25
    $region24: #{cllnet_forward.1} parent=1 // pred_region
      %s47 = ssub.s32 3072, 3072
      %48 = vsyncadd [#allocation5], %s47
      %s49 = sshll.u32 [#allocation6], 4
      %s50 = int_to_ptr.vmem [resolvable:$true] %s49
      %55 = dma.hbm_to_vmem [thread:$0]  %s5, 3072, %s50, [#allocation5], 64, 64, 4
    $region25: #{cllnet_forward.1} parent=1 // pred_fallthru
      _
    // Predicated region
    $region26: #{cllnet_forward.1} parent=1 // pred_check
      _
    $region27: #{cllnet_forward.1} parent=1 // pred_check_branch
      %57 = sbr.rel (0) target = $region29
    $region28: #{cllnet_forward.1} parent=1 // pred_region
      _
    $region29: #{cllnet_forward.1} parent=1 // pred_fallthru
      _
    // Predicated region
    $region30: #{cllnet_forward.1} parent=1 // pred_check
      _
    $region31: #{cllnet_forward.1} parent=1 // pred_check_branch
      %59 = sbr.rel (0) target = $region33
    $region32: #{cllnet_forward.1} parent=1 // pred_region
      %60 = dma.done [#allocation3], 256
    $region33: #{cllnet_forward.1} parent=1 // pred_fallthru
      _
    // Predicated region
    $region34: #{cllnet_forward.1} parent=1 // pred_check
      _
    $region35: #{cllnet_forward.1} parent=1 // pred_check_branch
      %62 = sbr.rel (0) target = $region37
    $region36: #{cllnet_forward.1} parent=1 // pred_region
      %63 = dma.done [#allocation5], 3072
    $region37: #{cllnet_forward.1} parent=1 // pred_fallthru
      _
    // Predicated region
    $region38: #{cllnet_forward.1} parent=1 // pred_check
      _
    $region39: #{cllnet_forward.1} parent=1 // pred_check_branch
      %65 = sbr.rel (0) target = $region41
    $region40: #{cllnet_forward.1} parent=1 // pred_region
      %66 = dma.done [#allocation5], 3072
    $region41: #{cllnet_forward.1} parent=1 // pred_fallthru
      _
    %v68 = vld [vmem:[%s0] sm:$0xf]
    %v69 = vld [vmem:[#allocation2] sm:$0xf]
    %v70 = vld [vmem:[#allocation2 + $0x4] sm:$0xf]
    %v71 = vld [vmem:[#allocation2 + $0x8] sm:$0xf]
    %v72 = vld [vmem:[#allocation2 + $0xc] sm:$0xf]
    %v73 = vld [vmem:[%s2] sm:$0x1]
    %v75 = vlaneseq
    %v76 = vshrl.u32 %v75, 7
    %v77 = vsub.s32 0, %v76
    %v78 = vrot.slane %v73, %v77
    %v84 = vunpack.c.l.b16 %v69
    %v85 = vunpack.c.l.b16 %v70
    %v86 = vunpack.c.l.b16 %v71
    %v87 = vunpack.c.l.b16 %v72
    %v88 = vpack.c.b16 %v85, %v84
    %v89 = vpack.c.b16 %v87, %v86
    %vm92 = vcmask 261120
    %v94 = vsel %vm92, %v68, 0
    %96 = vmatprep.subr.bf16.mxu0 0
    %97 = vmatpush1.bf16.msra.mxu0 %v88
    %98 = vmatprep.subr.bf16.mxu0 0
    %99 = vmatpush1.bf16.msra.mxu0 %v89
    %100 = vmatprep.subr.bf16.mxu0 0
    %101 = vmatpush1.bf16.msra.mxu0 0
    %102 = vmatprep.subr.bf16.mxu0 0
    %103 = vmatpush1.bf16.msra.mxu0 0
    %104 = vmatprep.subr.bf16.mxu0 0
    %105 = vmatpush1.bf16.msra.mxu0 0
    %106 = vmatprep.subr.bf16.mxu0 0
    %107 = vmatpush1.bf16.msra.mxu0 0
    %108 = vmatprep.subr.bf16.mxu0 0
    %109 = vmatpush1.bf16.msra.mxu0 0
    %110 = vmatprep.subr.bf16.mxu0 0
    %111 = vmatpush1.bf16.msra.mxu0 0
    %112 = vmatprep.subr.bf16.mxu0 0
    %113 = vmatpush1.bf16.msra.mxu0 0
    %114 = vmatprep.subr.bf16.mxu0 0
    %115 = vmatpush1.bf16.msra.mxu0 0
    %116 = vmatprep.subr.bf16.mxu0 0
    %117 = vmatpush1.bf16.msra.mxu0 0
    %118 = vmatprep.subr.bf16.mxu0 0
    %119 = vmatpush1.bf16.msra.mxu0 0
    %120 = vmatprep.subr.bf16.mxu0 0
    %121 = vmatpush1.bf16.msra.mxu0 0
    %122 = vmatprep.subr.bf16.mxu0 0
    %123 = vmatpush1.bf16.msra.mxu0 0
    %124 = vmatprep.subr.bf16.mxu0 0
    %125 = vmatpush1.bf16.msra.mxu0 0
    %126 = vmatprep.subr.bf16.mxu0 0
    %127 = vmatpush1.bf16.msra.mxu0 0
    %128 = vmatprep.mubr.bf16.mxu0 0
    %129 = vmatmul.mubr.bf16.gmra.mrb[0].mxu0 %v94
    %v130 = vpop.f32.mrb[0].mxu0
    %v131 = vadd.f32 %v78, %v130
    %v132 = vpop.f32.mrb[0].mxu0
    %v133 = vpop.f32.mrb[0].mxu0
    %v134 = vpop.f32.mrb[0].mxu0
    %135 = vdwg.mxu0
    %v136 = vmax.f32 %v131, 0.0
    %v137 = vpack.c.bf16 %v136, %v136
    %v138 = vld [vmem:[#allocation4] sm:$0xff]
    %v139 = vld [vmem:[#allocation4 + $0x8] sm:$0xf]
    %v140 = vld [vmem:[#allocation4 + $0xc] sm:$0xff]
    %v141 = vld [vmem:[#allocation4 + $0x14] sm:$0xf]
    %v142 = vld [vmem:[#allocation4 + $0x18] sm:$0xff]
    %v143 = vld [vmem:[#allocation4 + $0x20] sm:$0xf]
    %v144 = vld [vmem:[#allocation4 + $0x24] sm:$0xff]
    %v145 = vld [vmem:[#allocation4 + $0x2c] sm:$0xf]
    %v146 = vld [vmem:[#allocation4 + $0x30] sm:$0xff]
    %v147 = vld [vmem:[#allocation4 + $0x38] sm:$0xf]
    %v148 = vld [vmem:[#allocation4 + $0x3c] sm:$0xff]
    %v149 = vld [vmem:[#allocation4 + $0x44] sm:$0xf]
    %v150 = vld [vmem:[#allocation4 + $0x48] sm:$0xff]
    %v151 = vld [vmem:[#allocation4 + $0x50] sm:$0xf]
    %v152 = vld [vmem:[#allocation4 + $0x54] sm:$0xff]
    %v153 = vld [vmem:[#allocation4 + $0x5c] sm:$0xf]
    %v154 = vld [vmem:[#allocation4 + $0x60] sm:$0xff]
    %v155 = vld [vmem:[#allocation4 + $0x68] sm:$0xf]
    %v156 = vld [vmem:[#allocation4 + $0x6c] sm:$0xff]
    %v157 = vld [vmem:[#allocation4 + $0x74] sm:$0xf]
    %v158 = vld [vmem:[#allocation4 + $0x78] sm:$0xff]
    %v159 = vld [vmem:[#allocation4 + $0x80] sm:$0xf]
    %v160 = vld [vmem:[#allocation4 + $0x84] sm:$0xff]
    %v161 = vld [vmem:[#allocation4 + $0x8c] sm:$0xf]
    %v162 = vld [vmem:[#allocation4 + $0x90] sm:$0xff]
    %v163 = vld [vmem:[#allocation4 + $0x98] sm:$0xf]
    %v164 = vld [vmem:[#allocation4 + $0x9c] sm:$0xff]
    %v165 = vld [vmem:[#allocation4 + $0xa4] sm:$0xf]
    %v166 = vld [vmem:[#allocation4 + $0xa8] sm:$0xff]
    %v167 = vld [vmem:[#allocation4 + $0xb0] sm:$0xf]
    %v168 = vld [vmem:[#allocation4 + $0xb4] sm:$0xff]
    %v169 = vld [vmem:[#allocation4 + $0xbc] sm:$0xf]
    %v170 = vld [vmem:[%s4] sm:$0x7]
    %v172 = vlaneseq
    %v173 = vshrl.u32 %v172, 7
    %v174 = vsub.s32 0, %v173
    %v175 = vrot.slane %v170, %v174
    %v176 = vlaneseq
    %v177 = vshrl.u32 %v176, 7
    %v178 = vsub.s32 1, %v177
    %v179 = vrot.slane %v170, %v178
    %v180 = vlaneseq
    %v181 = vshrl.u32 %v180, 7
    %v182 = vsub.s32 2, %v181
    %v183 = vrot.slane %v170, %v182
    %v219 = vunpack.c.l.b16 %v138
    %v220 = vunpack.c.h.b16 %v138
    %v221 = vunpack.c.l.b16 %v139
    %v222 = vunpack.c.l.b16 %v140
    %v223 = vunpack.c.h.b16 %v140
    %v224 = vunpack.c.l.b16 %v141
    %v225 = vunpack.c.l.b16 %v142
    %v226 = vunpack.c.h.b16 %v142
    %v227 = vunpack.c.l.b16 %v143
    %v228 = vunpack.c.l.b16 %v144
    %v229 = vunpack.c.h.b16 %v144
    %v230 = vunpack.c.l.b16 %v145
    %v231 = vunpack.c.l.b16 %v146
    %v232 = vunpack.c.h.b16 %v146
    %v233 = vunpack.c.l.b16 %v147
    %v234 = vunpack.c.l.b16 %v148
    %v235 = vunpack.c.h.b16 %v148
    %v236 = vunpack.c.l.b16 %v149
    %v237 = vunpack.c.l.b16 %v150
    %v238 = vunpack.c.h.b16 %v150
    %v239 = vunpack.c.l.b16 %v151
    %v240 = vunpack.c.l.b16 %v152
    %v241 = vunpack.c.h.b16 %v152
    %v242 = vunpack.c.l.b16 %v153
    %v243 = vunpack.c.l.b16 %v154
    %v244 = vunpack.c.h.b16 %v154
    %v245 = vunpack.c.l.b16 %v155
    %v246 = vunpack.c.l.b16 %v156
    %v247 = vunpack.c.h.b16 %v156
    %v248 = vunpack.c.l.b16 %v157
    %v249 = vunpack.c.l.b16 %v158
    %v250 = vunpack.c.h.b16 %v158
    %v251 = vunpack.c.l.b16 %v159
    %v252 = vunpack.c.l.b16 %v160
    %v253 = vunpack.c.h.b16 %v160
    %v254 = vunpack.c.l.b16 %v161
    %v255 = vunpack.c.l.b16 %v162
    %v256 = vunpack.c.h.b16 %v162
    %v257 = vunpack.c.l.b16 %v163
    %v258 = vunpack.c.l.b16 %v164
    %v259 = vunpack.c.h.b16 %v164
    %v260 = vunpack.c.l.b16 %v165
    %v261 = vunpack.c.l.b16 %v166
    %v262 = vunpack.c.h.b16 %v166
    %v263 = vunpack.c.l.b16 %v167
    %v264 = vunpack.c.l.b16 %v168
    %v265 = vunpack.c.h.b16 %v168
    %v266 = vunpack.c.l.b16 %v169
    %v267 = vpack.c.b16 %v222, %v219
    %v268 = vpack.c.b16 %v223, %v220
    %v269 = vpack.c.b16 %v224, %v221
    %v270 = vpack.c.b16 %v228, %v225
    %v271 = vpack.c.b16 %v229, %v226
    %v272 = vpack.c.b16 %v230, %v227
    %v273 = vpack.c.b16 %v234, %v231
    %v274 = vpack.c.b16 %v235, %v232
    %v275 = vpack.c.b16 %v236, %v233
    %v276 = vpack.c.b16 %v240, %v237
    %v277 = vpack.c.b16 %v241, %v238
    %v278 = vpack.c.b16 %v242, %v239
    %v279 = vpack.c.b16 %v246, %v243
    %v280 = vpack.c.b16 %v247, %v244
    %v281 = vpack.c.b16 %v248, %v245
    %v282 = vpack.c.b16 %v252, %v249
    %v283 = vpack.c.b16 %v253, %v250
    %v284 = vpack.c.b16 %v254, %v251
    %v285 = vpack.c.b16 %v258, %v255
    %v286 = vpack.c.b16 %v259, %v256
    %v287 = vpack.c.b16 %v260, %v257
    %v288 = vpack.c.b16 %v264, %v261
    %v289 = vpack.c.b16 %v265, %v262
    %v290 = vpack.c.b16 %v266, %v263
    %315 = vmatprep.subr.bf16.mxu0 %v268
    %316 = vmatpush1.bf16.msra.mxu0 %v267
    %317 = vmatprep.subr.bf16.mxu0 %v271
    %318 = vmatpush1.bf16.msra.mxu0 %v270
    %319 = vmatprep.subr.bf16.mxu0 %v274
    %320 = vmatpush1.bf16.msra.mxu0 %v273
    %321 = vmatprep.subr.bf16.mxu0 %v277
    %322 = vmatpush1.bf16.msra.mxu0 %v276
    %323 = vmatprep.subr.bf16.mxu0 %v280
    %324 = vmatpush1.bf16.msra.mxu0 %v279
    %325 = vmatprep.subr.bf16.mxu0 %v283
    %326 = vmatpush1.bf16.msra.mxu0 %v282
    %327 = vmatprep.subr.bf16.mxu0 %v286
    %328 = vmatpush1.bf16.msra.mxu0 %v285
    %329 = vmatprep.subr.bf16.mxu0 %v289
    %330 = vmatpush1.bf16.msra.mxu0 %v288
    %331 = vmatprep.subr.bf16.mxu0 0
    %332 = vmatpush1.bf16.msra.mxu0 0
    %333 = vmatprep.subr.bf16.mxu0 0
    %334 = vmatpush1.bf16.msra.mxu0 0
    %335 = vmatprep.subr.bf16.mxu0 0
    %336 = vmatpush1.bf16.msra.mxu0 0
    %337 = vmatprep.subr.bf16.mxu0 0
    %338 = vmatpush1.bf16.msra.mxu0 0
    %339 = vmatprep.subr.bf16.mxu0 0
    %340 = vmatpush1.bf16.msra.mxu0 0
    %341 = vmatprep.subr.bf16.mxu0 0
    %342 = vmatpush1.bf16.msra.mxu0 0
    %343 = vmatprep.subr.bf16.mxu0 0
    %344 = vmatpush1.bf16.msra.mxu0 0
    %345 = vmatprep.subr.bf16.mxu0 0
    %346 = vmatpush1.bf16.msra.mxu0 0
    %347 = vmatprep.mubr.bf16.mxu0 0
    %348 = vmatmul.mubr.bf16.gmra.mrb[0].mxu0 %v137
    %v349 = vpop.f32.mrb[0].mxu0
    %v350 = vadd.f32 %v175, %v349
    %v351 = vpop.f32.mrb[0].mxu0
    %v352 = vadd.f32 %v179, %v351
    %v353 = vpop.f32.mrb[0].mxu0
    %v354 = vpop.f32.mrb[0].mxu0
    %355 = vdwg.mxu0
    %356 = vmatprep.subr.bf16.mxu0 0
    %357 = vmatpush1.bf16.msra.mxu0 %v269
    %358 = vmatprep.subr.bf16.mxu0 0
    %359 = vmatpush1.bf16.msra.mxu0 %v272
    %360 = vmatprep.subr.bf16.mxu0 0
    %361 = vmatpush1.bf16.msra.mxu0 %v275
    %362 = vmatprep.subr.bf16.mxu0 0
    %363 = vmatpush1.bf16.msra.mxu0 %v278
    %364 = vmatprep.subr.bf16.mxu0 0
    %365 = vmatpush1.bf16.msra.mxu0 %v281
    %366 = vmatprep.subr.bf16.mxu0 0
    %367 = vmatpush1.bf16.msra.mxu0 %v284
    %368 = vmatprep.subr.bf16.mxu0 0
    %369 = vmatpush1.bf16.msra.mxu0 %v287
    %370 = vmatprep.subr.bf16.mxu0 0
    %371 = vmatpush1.bf16.msra.mxu0 %v290
    %372 = vmatprep.subr.bf16.mxu0 0
    %373 = vmatpush1.bf16.msra.mxu0 0
    %374 = vmatprep.subr.bf16.mxu0 0
    %375 = vmatpush1.bf16.msra.mxu0 0
    %376 = vmatprep.subr.bf16.mxu0 0
    %377 = vmatpush1.bf16.msra.mxu0 0
    %378 = vmatprep.subr.bf16.mxu0 0
    %379 = vmatpush1.bf16.msra.mxu0 0
    %380 = vmatprep.subr.bf16.mxu0 0
    %381 = vmatpush1.bf16.msra.mxu0 0
    %382 = vmatprep.subr.bf16.mxu0 0
    %383 = vmatpush1.bf16.msra.mxu0 0
    %384 = vmatprep.subr.bf16.mxu0 0
    %385 = vmatpush1.bf16.msra.mxu0 0
    %386 = vmatprep.subr.bf16.mxu0 0
    %387 = vmatpush1.bf16.msra.mxu0 0
    %388 = vmatprep.mubr.bf16.mxu0 0
    %389 = vmatmul.mubr.bf16.gmra.mrb[0].mxu0 %v137
    %v390 = vpop.f32.mrb[0].mxu0
    %v391 = vadd.f32 %v183, %v390
    %v392 = vpop.f32.mrb[0].mxu0
    %v393 = vpop.f32.mrb[0].mxu0
    %v394 = vpop.f32.mrb[0].mxu0
    %395 = vdwg.mxu0
    %v396 = vmax.f32 %v350, 0.0
    %v397 = vmax.f32 %v352, 0.0
    %v398 = vmax.f32 %v391, 0.0
    %v399 = vpack.c.bf16 %v396, %v396
    %v400 = vpack.c.bf16 %v397, %v397
    %v401 = vpack.c.bf16 %v398, %v398
    %v402 = vld [vmem:[#allocation6] sm:$0xf]
    %v403 = vld [vmem:[#allocation6 + $0x4] sm:$0xf]
    %v404 = vld [vmem:[#allocation6 + $0x8] sm:$0xf]
    %v405 = vld [vmem:[#allocation6 + $0xc] sm:$0xf]
    %v406 = vld [vmem:[#allocation6 + $0x10] sm:$0xf]
    %v407 = vld [vmem:[#allocation6 + $0x14] sm:$0xf]
    %v408 = vld [vmem:[#allocation6 + $0x18] sm:$0xf]
    %v409 = vld [vmem:[#allocation6 + $0x1c] sm:$0xf]
    %v410 = vld [vmem:[#allocation6 + $0x20] sm:$0xf]
    %v411 = vld [vmem:[#allocation6 + $0x24] sm:$0xf]
    %v412 = vld [vmem:[#allocation6 + $0x28] sm:$0xf]
    %v413 = vld [vmem:[#allocation6 + $0x2c] sm:$0xf]
    %v414 = vld [vmem:[#allocation6 + $0x30] sm:$0xf]
    %v415 = vld [vmem:[#allocation6 + $0x34] sm:$0xf]
    %v416 = vld [vmem:[#allocation6 + $0x38] sm:$0xf]
    %v417 = vld [vmem:[#allocation6 + $0x3c] sm:$0xf]
    %v418 = vld [vmem:[#allocation6 + $0x40] sm:$0xf]
    %v419 = vld [vmem:[#allocation6 + $0x44] sm:$0xf]
    %v420 = vld [vmem:[#allocation6 + $0x48] sm:$0xf]
    %v421 = vld [vmem:[#allocation6 + $0x4c] sm:$0xf]
    %v422 = vld [vmem:[#allocation6 + $0x50] sm:$0xf]
    %v423 = vld [vmem:[#allocation6 + $0x54] sm:$0xf]
    %v424 = vld [vmem:[#allocation6 + $0x58] sm:$0xf]
    %v425 = vld [vmem:[#allocation6 + $0x5c] sm:$0xf]
    %v426 = vld [vmem:[#allocation6 + $0x60] sm:$0xf]
    %v427 = vld [vmem:[#allocation6 + $0x64] sm:$0xf]
    %v428 = vld [vmem:[#allocation6 + $0x68] sm:$0xf]
    %v429 = vld [vmem:[#allocation6 + $0x6c] sm:$0xf]
    %v430 = vld [vmem:[#allocation6 + $0x70] sm:$0xf]
    %v431 = vld [vmem:[#allocation6 + $0x74] sm:$0xf]
    %v432 = vld [vmem:[#allocation6 + $0x78] sm:$0xf]
    %v433 = vld [vmem:[#allocation6 + $0x7c] sm:$0xf]
    %v434 = vld [vmem:[#allocation6 + $0x80] sm:$0xf]
    %v435 = vld [vmem:[#allocation6 + $0x84] sm:$0xf]
    %v436 = vld [vmem:[#allocation6 + $0x88] sm:$0xf]
    %v437 = vld [vmem:[#allocation6 + $0x8c] sm:$0xf]
    %v438 = vld [vmem:[#allocation6 + $0x90] sm:$0xf]
    %v439 = vld [vmem:[#allocation6 + $0x94] sm:$0xf]
    %v440 = vld [vmem:[#allocation6 + $0x98] sm:$0xf]
    %v441 = vld [vmem:[#allocation6 + $0x9c] sm:$0xf]
    %v442 = vld [vmem:[#allocation6 + $0xa0] sm:$0xf]
    %v443 = vld [vmem:[#allocation6 + $0xa4] sm:$0xf]
    %v444 = vld [vmem:[#allocation6 + $0xa8] sm:$0xf]
    %v445 = vld [vmem:[#allocation6 + $0xac] sm:$0xf]
    %v446 = vld [vmem:[#allocation6 + $0xb0] sm:$0xf]
    %v447 = vld [vmem:[#allocation6 + $0xb4] sm:$0xf]
    %v448 = vld [vmem:[#allocation6 + $0xb8] sm:$0xf]
    %v449 = vld [vmem:[#allocation6 + $0xbc] sm:$0xf]
    %v450 = vld [vmem:[%s6] sm:$0x1]
    %v452 = vlaneseq
    %v453 = vshrl.u32 %v452, 7
    %v454 = vsub.s32 0, %v453
    %v455 = vrot.slane %v450, %v454
    %v505 = vunpack.c.l.b16 %v402
    %v506 = vunpack.c.l.b16 %v403
    %v507 = vunpack.c.l.b16 %v404
    %v508 = vunpack.c.l.b16 %v405
    %v509 = vunpack.c.l.b16 %v406
    %v510 = vunpack.c.l.b16 %v407
    %v511 = vunpack.c.l.b16 %v408
    %v512 = vunpack.c.l.b16 %v409
    %v513 = vunpack.c.l.b16 %v410
    %v514 = vunpack.c.l.b16 %v411
    %v515 = vunpack.c.l.b16 %v412
    %v516 = vunpack.c.l.b16 %v413
    %v517 = vunpack.c.l.b16 %v414
    %v518 = vunpack.c.l.b16 %v415
    %v519 = vunpack.c.l.b16 %v416
    %v520 = vunpack.c.l.b16 %v417
    %v521 = vunpack.c.l.b16 %v418
    %v522 = vunpack.c.l.b16 %v419
    %v523 = vunpack.c.l.b16 %v420
    %v524 = vunpack.c.l.b16 %v421
    %v525 = vunpack.c.l.b16 %v422
    %v526 = vunpack.c.l.b16 %v423
    %v527 = vunpack.c.l.b16 %v424
    %v528 = vunpack.c.l.b16 %v425
    %v529 = vunpack.c.l.b16 %v426
    %v530 = vunpack.c.l.b16 %v427
    %v531 = vunpack.c.l.b16 %v428
    %v532 = vunpack.c.l.b16 %v429
    %v533 = vunpack.c.l.b16 %v430
    %v534 = vunpack.c.l.b16 %v431
    %v535 = vunpack.c.l.b16 %v432
    %v536 = vunpack.c.l.b16 %v433
    %v537 = vunpack.c.l.b16 %v434
    %v538 = vunpack.c.l.b16 %v435
    %v539 = vunpack.c.l.b16 %v436
    %v540 = vunpack.c.l.b16 %v437
    %v541 = vunpack.c.l.b16 %v438
    %v542 = vunpack.c.l.b16 %v439
    %v543 = vunpack.c.l.b16 %v440
    %v544 = vunpack.c.l.b16 %v441
    %v545 = vunpack.c.l.b16 %v442
    %v546 = vunpack.c.l.b16 %v443
    %v547 = vunpack.c.l.b16 %v444
    %v548 = vunpack.c.l.b16 %v445
    %v549 = vunpack.c.l.b16 %v446
    %v550 = vunpack.c.l.b16 %v447
    %v551 = vunpack.c.l.b16 %v448
    %v552 = vunpack.c.l.b16 %v449
    %v553 = vpack.c.b16 %v506, %v505
    %v554 = vpack.c.b16 %v508, %v507
    %v555 = vpack.c.b16 %v510, %v509
    %v556 = vpack.c.b16 %v512, %v511
    %v557 = vpack.c.b16 %v514, %v513
    %v558 = vpack.c.b16 %v516, %v515
    %v559 = vpack.c.b16 %v518, %v517
    %v560 = vpack.c.b16 %v520, %v519
    %v561 = vpack.c.b16 %v522, %v521
    %v562 = vpack.c.b16 %v524, %v523
    %v563 = vpack.c.b16 %v526, %v525
    %v564 = vpack.c.b16 %v528, %v527
    %v565 = vpack.c.b16 %v530, %v529
    %v566 = vpack.c.b16 %v532, %v531
    %v567 = vpack.c.b16 %v534, %v533
    %v568 = vpack.c.b16 %v536, %v535
    %v569 = vpack.c.b16 %v538, %v537
    %v570 = vpack.c.b16 %v540, %v539
    %v571 = vpack.c.b16 %v542, %v541
    %v572 = vpack.c.b16 %v544, %v543
    %v573 = vpack.c.b16 %v546, %v545
    %v574 = vpack.c.b16 %v548, %v547
    %v575 = vpack.c.b16 %v550, %v549
    %v576 = vpack.c.b16 %v552, %v551
    %601 = vmatprep.subr.bf16.mxu0 0
    %602 = vmatpush1.bf16.msra.mxu0 %v553
    %603 = vmatprep.subr.bf16.mxu0 0
    %604 = vmatpush1.bf16.msra.mxu0 %v554
    %605 = vmatprep.subr.bf16.mxu0 0
    %606 = vmatpush1.bf16.msra.mxu0 %v555
    %607 = vmatprep.subr.bf16.mxu0 0
    %608 = vmatpush1.bf16.msra.mxu0 %v556
    %609 = vmatprep.subr.bf16.mxu0 0
    %610 = vmatpush1.bf16.msra.mxu0 %v557
    %611 = vmatprep.subr.bf16.mxu0 0
    %612 = vmatpush1.bf16.msra.mxu0 %v558
    %613 = vmatprep.subr.bf16.mxu0 0
    %614 = vmatpush1.bf16.msra.mxu0 %v559
    %615 = vmatprep.subr.bf16.mxu0 0
    %616 = vmatpush1.bf16.msra.mxu0 %v560
    %617 = vmatprep.subr.bf16.mxu0 0
    %618 = vmatpush1.bf16.msra.mxu0 %v561
    %619 = vmatprep.subr.bf16.mxu0 0
    %620 = vmatpush1.bf16.msra.mxu0 %v562
    %621 = vmatprep.subr.bf16.mxu0 0
    %622 = vmatpush1.bf16.msra.mxu0 %v563
    %623 = vmatprep.subr.bf16.mxu0 0
    %624 = vmatpush1.bf16.msra.mxu0 %v564
    %625 = vmatprep.subr.bf16.mxu0 0
    %626 = vmatpush1.bf16.msra.mxu0 %v565
    %627 = vmatprep.subr.bf16.mxu0 0
    %628 = vmatpush1.bf16.msra.mxu0 %v566
    %629 = vmatprep.subr.bf16.mxu0 0
    %630 = vmatpush1.bf16.msra.mxu0 %v567
    %631 = vmatprep.subr.bf16.mxu0 0
    %632 = vmatpush1.bf16.msra.mxu0 %v568
    %633 = vmatprep.mubr.bf16.mxu0 %v400
    %634 = vmatmul.mubr.bf16.gmra.mrb[0].mxu0 %v399
    %v635 = vpop.f32.mrb[0].mxu0
    %v636 = vadd.f32 %v455, %v635
    %v637 = vpop.f32.mrb[0].mxu0
    %v638 = vpop.f32.mrb[0].mxu0
    %v639 = vpop.f32.mrb[0].mxu0
    %640 = vdwg.mxu0
    %641 = vmatprep.subr.bf16.mxu0 0
    %642 = vmatpush1.bf16.msra.mxu0 %v569
    %643 = vmatprep.subr.bf16.mxu0 0
    %644 = vmatpush1.bf16.msra.mxu0 %v570
    %645 = vmatprep.subr.bf16.mxu0 0
    %646 = vmatpush1.bf16.msra.mxu0 %v571
    %647 = vmatprep.subr.bf16.mxu0 0
    %648 = vmatpush1.bf16.msra.mxu0 %v572
    %649 = vmatprep.subr.bf16.mxu0 0
    %650 = vmatpush1.bf16.msra.mxu0 %v573
    %651 = vmatprep.subr.bf16.mxu0 0
    %652 = vmatpush1.bf16.msra.mxu0 %v574
    %653 = vmatprep.subr.bf16.mxu0 0
    %654 = vmatpush1.bf16.msra.mxu0 %v575
    %655 = vmatprep.subr.bf16.mxu0 0
    %656 = vmatpush1.bf16.msra.mxu0 %v576
    %657 = vmatprep.subr.bf16.mxu0 0
    %658 = vmatpush1.bf16.msra.mxu0 0
    %659 = vmatprep.subr.bf16.mxu0 0
    %660 = vmatpush1.bf16.msra.mxu0 0
    %661 = vmatprep.subr.bf16.mxu0 0
    %662 = vmatpush1.bf16.msra.mxu0 0
    %663 = vmatprep.subr.bf16.mxu0 0
    %664 = vmatpush1.bf16.msra.mxu0 0
    %665 = vmatprep.subr.bf16.mxu0 0
    %666 = vmatpush1.bf16.msra.mxu0 0
    %667 = vmatprep.subr.bf16.mxu0 0
    %668 = vmatpush1.bf16.msra.mxu0 0
    %669 = vmatprep.subr.bf16.mxu0 0
    %670 = vmatpush1.bf16.msra.mxu0 0
    %671 = vmatprep.subr.bf16.mxu0 0
    %672 = vmatpush1.bf16.msra.mxu0 0
    %673 = vmatprep.mubr.bf16.mxu0 0
    %674 = vmatmul.mubr.bf16.gmra.mrb[0].mxu0 %v401
    %v675 = vpop.f32.mrb[0].mxu0
    %v676 = vadd.f32 %v636, %v675
    %v677 = vpop.f32.mrb[0].mxu0
    %v678 = vpop.f32.mrb[0].mxu0
    %v679 = vpop.f32.mrb[0].mxu0
    %680 = vdwg.mxu0
    %681 = vst [vmem:[%s7] sm:$0xff] %v676
    // Predicated region
    $region42: #{cllnet_forward.1} parent=1 // pred_check
      _
    $region43: #{cllnet_forward.1} parent=1 // pred_check_branch
      %683 = sbr.rel (0) target = $region45
    $region44: #{cllnet_forward.1} parent=1 // pred_region
      _
    $region45: #{cllnet_forward.1} parent=1 // pred_fallthru
      _
    // Predicated region
    $region46: #{cllnet_forward.1} parent=1 // pred_check
      _
    $region47: #{cllnet_forward.1} parent=1 // pred_check_branch
      %685 = sbr.rel (0) target = $region49
    $region48: #{cllnet_forward.1} parent=1 // pred_region
      _
    $region49: #{cllnet_forward.1} parent=1 // pred_fallthru
      _
    %686 = vsyncpa [#allocation3], 1
    %687 = vsyncpa [#allocation5], 1

</llo_original>
